<compile_context>
chip_gen: v6e
topology: v6e:2x2x1
jax: 0.10.0
libtpu: 0.0.40
codegen_flags: <defaults>
</compile_context>

<pallas_src>
import functools

import numpy as np
import jax
import jax.numpy as jnp
from jax import lax
from jax.experimental import pallas as pl
from jax.experimental.pallas import tpu as pltpu

BN_EPS = 1e-5


def _round_up(x, m):
    return (x + m - 1) // m * m


def _pick_pixel_tile(hw, target):
    """Largest lane tile that divides H*W, is a multiple of 128 and <= target.
    Falls back to the full H*W (block dim == full array dim is always legal)."""
    if hw <= target or hw % 128 != 0:
        return hw
    t = (min(target, hw) // 128) * 128
    while t >= 128:
        if hw % t == 0:
            return t
        t -= 128
    return hw


def _pick_image_block(b, c, max_rows=64):
    """Smallest image-group size b_blk dividing B with (b_blk*C) % 8 == 0 so the
    sublane axis of every block is full.  Falls back to the whole batch."""
    for bb in range(1, b + 1):
        if b % bb == 0 and (bb * c) % 8 == 0 and bb * c <= max_rows:
            return bb
    return b


# ----------------------------------------------------------------------------
# Kernel 1: raw batch moments of x (row sums + lane-axis Gram on the MXU),
#           folded through W1 only at the end of each image group.
#   x_rows : (B*C, H*W)  native-layout view of x (free reshape, no HBM copy)
#   grid   : (image groups ["parallel"], pixel tiles ["arbitrary"])
#   out    : per-group partial S1 = sum_pix h, S2 = sum_pix h^2, h = W1 @ x
# ----------------------------------------------------------------------------
def _bn_moments_kernel(x_ref, w1_ref, s1_ref, s2_ref, sum_ref, gram_ref, *, b_blk, c):
    t = pl.program_id(1)

    @pl.when(t == 0)
    def _init():
        sum_ref[...] = jnp.zeros_like(sum_ref)
        gram_ref[...] = jnp.zeros_like(gram_ref)

    xb = x_ref[...]                                       # (b_blk*C, tile_hw)
    sum_ref[...] += jnp.sum(xb, axis=1, keepdims=True)    # row sums (XLU)
    gram_ref[...] += lax.dot_general(                     # X @ X^T on the MXU
        xb, xb, dimension_numbers=(((1,), (1,)), ((), ())),
        preferred_element_type=jnp.float32)

    @pl.when(t == pl.num_programs(1) - 1)
    def _fold():
        # Combine the per-image diagonal CxC Gram blocks, then fold through W1:
        #   S1_c = sum_pix (W1 x)_c   = (W1 @ sum_pix x)_c
        #   S2_c = sum_pix (W1 x)_c^2 = (W1 (sum_pix x x^T) W1^T)_cc
        w1 = w1_ref[...]
        sx = jnp.zeros((c, 1), jnp.float32)
        gx = jnp.zeros((c, c), jnp.float32)
        for i in range(b_blk):                            # static, tiny
            sx = sx + sum_ref[i * c:(i + 1) * c, :]
            gx = gx + gram_ref[i * c:(i + 1) * c, i * c:(i + 1) * c]
        s1 = jnp.dot(w1, sx, preferred_element_type=jnp.float32)      # (C, 1)
        wg = jnp.dot(w1, gx, preferred_element_type=jnp.float32)      # (C, C)
        s2 = jnp.sum(wg * w1, axis=1, keepdims=True)                  # diag(W1 G W1^T)
        s1_ref[...] = s1.reshape(s1_ref.shape)
        s2_ref[...] = s2.reshape(s2_ref.shape)


def bn_batch_moments(x_rows, w1, b_blk, tile_hw):
    rows_total, hw = x_rows.shape
    c = w1.shape[0]
    rows_blk = b_blk * c
    nb = rows_total // rows_blk
    nt = hw // tile_hw
    kernel = functools.partial(_bn_moments_kernel, b_blk=b_blk, c=c)
    itemsize = jnp.dtype(x_rows.dtype).itemsize
    blk_bytes = 2 * _round_up(rows_blk, 8) * tile_hw * itemsize      # double-buffered
    vmem_limit = None if blk_bytes <= (12 << 20) else min(blk_bytes + (8 << 20), 48 << 20)
    return pl.pallas_call(
        kernel,
        out_shape=(jax.ShapeDtypeStruct((nb, c, 1), jnp.float32),
                   jax.ShapeDtypeStruct((nb, c, 1), jnp.float32)),
        grid=(nb, nt),
        in_specs=[
            pl.BlockSpec((rows_blk, tile_hw), lambda b, t: (b, t)),   # x tile
            pl.BlockSpec((c, c), lambda b, t: (0, 0)),                # W1 (resident)
        ],
        out_specs=(pl.BlockSpec((1, c, 1), lambda b, t: (b, 0, 0)),
                   pl.BlockSpec((1, c, 1), lambda b, t: (b, 0, 0))),
        scratch_shapes=[pltpu.VMEM((rows_blk, 1), jnp.float32),       # running sum(x)
                        pltpu.VMEM((rows_blk, rows_blk), jnp.float32)],  # running X X^T
        compiler_params=pltpu.CompilerParams(
            dimension_semantics=("parallel", "arbitrary"),            # v7x: 2 TCs
            vmem_limit_bytes=vmem_limit),
        cost_estimate=pl.CostEstimate(
            flops=(2 * rows_blk * rows_blk + rows_blk) * hw * nb,
            transcendentals=0,
            bytes_accessed=rows_total * hw * itemsize + 4 * (c * c + 2 * nb * c)),
    )(x_rows, w1)


# ----------------------------------------------------------------------------
# Kernel 2: fused (conv1 + BN + ReLU) and (conv2 + Linear) at the cropped pixels,
#           as exactly two full-width matmuls.
#   x_ref    : (P2*C, bl_blk)   cropped pixels, rows ordered p*C + c, lanes = B*L
#   w1bd_ref : (P2*C, P2*C)     block-diagonal scale-folded W1 (kron(I_P2, scale*W1))
#   bias_ref : (P2*C, 1)        BN bias tiled over patch offsets
#   v_ref    : (P2*C, D)        conv2 folded into the Linear weight
#   o_ref    : (bl_blk, D=128)  lane-dense output
# ----------------------------------------------------------------------------
def _proj_linear_kernel(x_ref, w1bd_ref, bias_ref, v_ref, o_ref):
    a = jnp.dot(w1bd_ref[...], x_ref[...], preferred_element_type=jnp.float32)
    a = jnp.maximum(a + bias_ref[...], 0.0)                           # BN + ReLU
    o_ref[...] = lax.dot_general(                                     # conv2+Linear
        a, v_ref[...], dimension_numbers=(((0,), (0,)), ((), ())),
        preferred_element_type=jnp.float32).astype(o_ref.dtype)


def crop_project_linear(x_crop, w1bd, bias_bd, v_fold, bl_blk):
    r, bl_pad = x_crop.shape
    d = v_fold.shape[-1]
    nbl = bl_pad // bl_blk
    return pl.pallas_call(
        _proj_linear_kernel,
        out_shape=jax.ShapeDtypeStruct((bl_pad, d), jnp.float32),
        grid=(nbl,),
        in_specs=[
            pl.BlockSpec((r, bl_blk), lambda j: (0, j)),
            pl.BlockSpec((r, r), lambda j: (0, 0)),
            pl.BlockSpec((r, 1), lambda j: (0, 0)),
            pl.BlockSpec((r, d), lambda j: (0, 0)),
        ],
        out_specs=pl.BlockSpec((bl_blk, d), lambda j: (j, 0)),
        compiler_params=pltpu.CompilerParams(dimension_semantics=("parallel",)),
        cost_estimate=pl.CostEstimate(
            flops=2 * (r * r + r * d) * bl_pad,
            transcendentals=0,
            bytes_accessed=4 * (r * bl_pad + r * r + r + r * d + bl_pad * d)),
    )(x_crop, w1bd, bias_bd, v_fold)


# ----------------------------------------------------------------------------
# CropPatches index logic (compile-time constants, mirrors the PyTorch module)
# ----------------------------------------------------------------------------
def get_indices(height_feat, width_feat, no_of_patches, patch_size):
    height_indices = [np.linspace(0, height_feat, 3, dtype=int)]
    width_indices = [np.linspace(0, width_feat, 3, dtype=int)]
    if no_of_patches == 13:
        height_indices.append([height_feat // 4, 3 * height_feat // 4])
        width_indices.append([width_feat // 4, 3 * width_feat // 4])
    columns_indices = [
        [int(idx + i) for idx in sub for i in range(patch_size)] for sub in height_indices
    ]
    rows_indices = [
        [int(idx + i) for idx in sub for i in range(patch_size)] for sub in width_indices
    ]
    return columns_indices, rows_indices


def _crop_pixel_indices(H, W, patch_size, no_of_patches):
    """Per patch l: (row_idx[l, ki], col_idx[l, kj]) = (H, W) coords of pixel (ki, kj)."""
    margin = 4 if patch_size == 3 else 1
    columns_indices, rows_indices = get_indices(H - margin, W - margin,
                                                no_of_patches, patch_size)
    row_idx, col_idx = [], []
    for cols, rows in zip(columns_indices, rows_indices):
        nr = len(rows) // patch_size
        nc = len(cols) // patch_size
        for pi in range(nr):
            for pj in range(nc):
                row_idx.append([rows[pi * patch_size + ki] for ki in range(patch_size)])
                col_idx.append([cols[pj * patch_size + kj] for kj in range(patch_size)])
    return np.asarray(row_idx, np.int32), np.asarray(col_idx, np.int32)   # (L, ps)


# ----------------------------------------------------------------------------
# One-time parameter preparation (W2 folded into the Linear weight offline)
# ----------------------------------------------------------------------------
def prepare_params(params, patch_size):
    C = params["w1"].shape[0]
    D, F = params["w_lin"].shape
    P2 = patch_size * patch_size
    assert F == C * P2
    w_lin = jnp.asarray(params["w_lin"], jnp.float32)
    w2 = jnp.asarray(params["w2"], jnp.float32)
    # conv2 is linear and sits after the ReLU, so it folds exactly into the Linear:
    #   v_fold[p*C + c_in, d] = sum_{c_out} w2[c_out, c_in] * w_lin[d, c_out*P2 + p]
    v = w_lin.reshape(D, C, P2)                                  # v[d, c_out, p]
    v_fold = jnp.einsum("dcp,ck->pkd", v, w2).reshape(P2 * C, D)
    return {
        "w1": jnp.asarray(params["w1"], jnp.float32),
        "gamma_col": jnp.asarray(params["gamma"], jnp.float32).reshape(C, 1),
        "beta_col": jnp.asarray(params["beta"], jnp.float32).reshape(C, 1),
        "v_fold": v_fold,
    }


# ----------------------------------------------------------------------------
# Full forward
# ----------------------------------------------------------------------------
def decoder_projection_forward(x_nchw, prep, patch_size=3, no_of_patches=9,
                               tile_pixels=64 * 1024, bl_block=512):
    B, C, H, W = x_nchw.shape
    HW = H * W
    npix = B * HW
    P2 = patch_size * patch_size

    # ---- Pass 1: BN batch moments over all pixels (native layout, no HBM copy) ----
    x_rows = x_nchw.reshape(B * C, HW)          # free metadata reshape
    b_blk = _pick_image_block(B, C)
    tile_hw = _pick_pixel_tile(HW, tile_pixels)
    ps1, ps2 = bn_batch_moments(x_rows, prep["w1"], b_blk, tile_hw)

    # ---- Tiny XLA epilogue: finalize BN stats, fold scale into conv1 --------------
    inv_n = 1.0 / float(npix)
    s1 = jnp.sum(ps1, axis=0)                   # (C, 1)  sum_pix h
    s2 = jnp.sum(ps2, axis=0)                   # (C, 1)  sum_pix h^2
    mean = s1 * inv_n
    var = jnp.maximum(s2 * inv_n - mean * mean, 0.0)
    # TODO(synk): single-pass E[h^2]-E[h]^2 in fp32; switch to a shifted/Welford
    # accumulation if production Npix or |mean|/std grows enough to lose precision.
    scale = prep["gamma_col"] * lax.rsqrt(var + BN_EPS)              # (C, 1)
    bias = prep["beta_col"] - mean * scale                           # (C, 1)
    w1_scaled = scale * prep["w1"]                                   # BN scale -> W1
    w1bd = jnp.kron(jnp.eye(P2, dtype=jnp.float32), w1_scaled)       # (P2*C, P2*C)
    bias_bd = jnp.tile(bias, (P2, 1))                                # (P2*C, 1)

    # ---- Crop gather (compile-time constant indices) ------------------------------
    # TODO(synk): kept as an XLA constant-index gather (a few hundred floats); an
    # in-kernel DMA gather adds complexity for no measurable win at these sizes.
    row_idx, col_idx = _crop_pixel_indices(H, W, patch_size, no_of_patches)
    L, ps = row_idx.shape
    BL = B * L
    xg = x_nchw[:, :, row_idx[:, :, None], col_idx[:, None, :]]      # (B, C, L, ps, ps)
    xg = xg.reshape(B, C, L, P2)                                     # p = ki*ps + kj
    xc = jnp.transpose(xg, (3, 1, 0, 2)).reshape(P2 * C, BL)         # rows: p*C + c
    bl_pad = _round_up(BL, 8) if BL <= bl_block else _round_up(BL, bl_block)
    if bl_pad != BL:
        xc = jnp.pad(xc, ((0, 0), (0, bl_pad - BL)))                 # lane-dense pad
    bl_blk = min(bl_pad, bl_block)

    # ---- Pass 2: fused projection + Linear at the cropped pixels ------------------
    out = crop_project_linear(xc, w1bd, bias_bd, prep["v_fold"], bl_blk)
    return out[:BL].reshape(B, L, -1)


# ----------------------------------------------------------------------------
# Pure-JAX reference (mirrors the PyTorch module's forward semantics)
# ----------------------------------------------------------------------------
def crop_patches_nhwc(y_nhwc, columns_indices, rows_indices, patch_size):
    B = y_nhwc.shape[0]
    C = y_nhwc.shape[-1]
    out = []
    for cols, rows in zip(columns_indices, rows_indices):
        cols = np.asarray(cols)
        rows = np.asarray(rows)
        grid = y_nhwc[:, rows[:, None], cols[None, :], :]
        nr = len(rows) // patch_size
        nc = len(cols) // patch_size
        grid = grid.reshape(B, nr, patch_size, nc, patch_size, C)
        grid = jnp.transpose(grid, (0, 1, 3, 5, 2, 4))   # (B, nr, nc, C, ps, ps)
        out.append(grid.reshape(B, nr * nc, C * patch_size * patch_size))
    return jnp.concatenate(out, axis=1)


def reference_forward(x_nchw, params, patch_size=3, no_of_patches=9):
    B, C, H, W = x_nchw.shape
    x_pix = jnp.transpose(x_nchw, (0, 2, 3, 1)).reshape(B * H * W, C)
    h = x_pix @ params["w1"].T
    mean = h.mean(0, keepdims=True)
    var = ((h - mean) ** 2).mean(0, keepdims=True)
    hn = (h - mean) * lax.rsqrt(var + BN_EPS) * params["gamma"] + params["beta"]
    hn = jnp.maximum(hn, 0.0)
    y_nhwc = (hn @ params["w2"].T).reshape(B, H, W, C)
    margin = 4 if patch_size == 3 else 1
    cols_idx, rows_idx = get_indices(H - margin, W - margin, no_of_patches, patch_size)
    feats = crop_patches_nhwc(y_nhwc, cols_idx, rows_idx, patch_size)
    return feats @ params["w_lin"].T


if __name__ == "__main__":
    B, C, H, W = 2, 4, 16, 16
    patch_size, no_of_patches, final_dim = 3, 9, 128

    key = jax.random.PRNGKey(0)
    k_x, k_w1, k_w2, k_g, k_b, k_lin = jax.random.split(key, 6)
    x = jax.random.normal(k_x, (B, C, H, W), dtype=jnp.float32)
    params = {
        "w1": jax.random.normal(k_w1, (C, C), dtype=jnp.float32) * 0.1,
        "w2": jax.random.normal(k_w2, (C, C), dtype=jnp.float32) * 0.1,
        "gamma": jax.random.uniform(k_g, (C,), jnp.float32, 0.5, 1.5),
        "beta": jax.random.normal(k_b, (C,), dtype=jnp.float32) * 0.1,
        "w_lin": jax.random.normal(k_lin, (final_dim, C * patch_size * patch_size),
                                   dtype=jnp.float32) * 0.1,
    }
    prep = prepare_params(params, patch_size)

    # tile_pixels=128 -> a 2-step pixel-reduction grid at this demo size, exercising
    # the cross-tile moment accumulation.  Production: 32K-64K pixels per tile
    # (v5e/v6e), ~256K on v7x (the wrapper raises vmem_limit_bytes automatically).
    fwd = jax.jit(functools.partial(decoder_projection_forward,
                                    patch_size=patch_size,
                                    no_of_patches=no_of_patches,
                                    tile_pixels=128))
    out = jax.block_until_ready(fwd(x, prep))
    assert out.shape == (B, no_of_patches, final_dim), out.shape

    ref = jax.block_until_ready(reference_forward(x, params, patch_size, no_of_patches))
    np.testing.assert_allclose(np.asarray(out), np.asarray(ref), rtol=1e-3, atol=1e-4)

    print("KERNEL_OK")
</pallas_src>

<mosaic_0001>
module attributes {stable_mosaic.version = 11 : i64} {
  func.func @_bn_moments_kernel(%arg0: i32, %arg1: i32, %arg2: memref<8x128xf32, #tpu.memory_space<vmem>>, %arg3: memref<4x4xf32, #tpu.memory_space<vmem>>, %arg4: memref<1x4x1xf32, #tpu.memory_space<vmem>>, %arg5: memref<1x4x1xf32, #tpu.memory_space<vmem>>, %arg6: memref<8x1xf32, #tpu.memory_space<vmem>>, %arg7: memref<8x8xf32, #tpu.memory_space<vmem>>) attributes {dimension_semantics = [#tpu.dimension_semantics<parallel>, #tpu.dimension_semantics<arbitrary>], iteration_bounds = array<i64: 1, 2>, scalar_prefetch = 0 : i64, scratch_operands = 2 : i64, tpu.core_type = #tpu.core_type<tc>, window_params = [{transform_indices = @transform_0, window_bounds = array<i64: 8, 128>}, {pipeline_mode = #tpu.pipeline_mode<synchronous>, transform_indices = @transform_1, window_bounds = array<i64: 4, 4>}, {transform_indices = @transform_2, window_bounds = array<i64: 1, 4, 1>}, {transform_indices = @transform_3, window_bounds = array<i64: 1, 4, 1>}]} {
    %c0_i32 = arith.constant 0 : i32
    %0 = arith.cmpi eq, %arg1, %c0_i32 : i32
    %1 = arith.extui %0 : i1 to i32
    %c0_i32_0 = arith.constant 0 : i32
    %2 = arith.cmpi ne, %1, %c0_i32_0 : i32
    scf.if %2 {
      %cst_12 = arith.constant 0.000000e+00 : f32
      %16 = vector.broadcast %cst_12 : f32 to vector<8x1xf32>
      %c0_13 = arith.constant 0 : index
      %c0_14 = arith.constant 0 : index
      %17 = vector.load %arg6[%c0_13, %c0_14] : memref<8x1xf32, #tpu.memory_space<vmem>>, vector<8x1xf32>
      tpu.vector_store %arg6[%c0_13, %c0_14], %16 {strides = array<i32>} : memref<8x1xf32, #tpu.memory_space<vmem>>, vector<8x1xf32>,
      %cst_15 = arith.constant 0.000000e+00 : f32
      %18 = vector.broadcast %cst_15 : f32 to vector<8x8xf32>
      %c0_16 = arith.constant 0 : index
      %c0_17 = arith.constant 0 : index
      %19 = vector.load %arg7[%c0_16, %c0_17] : memref<8x8xf32, #tpu.memory_space<vmem>>, vector<8x8xf32>
      tpu.vector_store %arg7[%c0_16, %c0_17], %18 {strides = array<i32>} : memref<8x8xf32, #tpu.memory_space<vmem>>, vector<8x8xf32>,
    } else {
    }
    %c0 = arith.constant 0 : index
    %c0_1 = arith.constant 0 : index
    %3 = vector.load %arg2[%c0, %c0_1] : memref<8x128xf32, #tpu.memory_space<vmem>>, vector<8x128xf32>
    %c0_2 = arith.constant 0 : index
    %c0_3 = arith.constant 0 : index
    %4 = vector.load %arg6[%c0_2, %c0_3] : memref<8x1xf32, #tpu.memory_space<vmem>>, vector<8x1xf32>
    %cst = arith.constant dense<0.000000e+00> : vector<8xf32>
    %5 = vector.multi_reduction <add>, %3, %cst [1] : vector<8x128xf32> to vector<8xf32>
    %6 = vector.shape_cast %5 : vector<8xf32> to vector<8x1xf32>
    %7 = arith.addf %4, %6 : vector<8x1xf32>
    %c0_4 = arith.constant 0 : index
    %c0_5 = arith.constant 0 : index
    %8 = vector.load %arg6[%c0_4, %c0_5] : memref<8x1xf32, #tpu.memory_space<vmem>>, vector<8x1xf32>
    tpu.vector_store %arg6[%c0_4, %c0_5], %7 {strides = array<i32>} : memref<8x1xf32, #tpu.memory_space<vmem>>, vector<8x1xf32>,
    %c0_6 = arith.constant 0 : index
    %c0_7 = arith.constant 0 : index
    %9 = vector.load %arg7[%c0_6, %c0_7] : memref<8x8xf32, #tpu.memory_space<vmem>>, vector<8x8xf32>
    %cst_8 = arith.constant dense<0.000000e+00> : vector<8x8xf32>
    %10 = tpu.matmul %3, %3, %cst_8 {dimension_numbers = #tpu.dot_dimension_numbers<[1], [1], [0], [0], [0, 0, 1, 0], [], []>} : vector<8x128xf32>, vector<8x128xf32>, vector<8x8xf32> -> vector<8x8xf32>
    %11 = arith.addf %9, %10 : vector<8x8xf32>
    %c0_9 = arith.constant 0 : index
    %c0_10 = arith.constant 0 : index
    %12 = vector.load %arg7[%c0_9, %c0_10] : memref<8x8xf32, #tpu.memory_space<vmem>>, vector<8x8xf32>
    tpu.vector_store %arg7[%c0_9, %c0_10], %11 {strides = array<i32>} : memref<8x8xf32, #tpu.memory_space<vmem>>, vector<8x8xf32>,
    %c1_i32 = arith.constant 1 : i32
    %13 = arith.cmpi eq, %arg1, %c1_i32 : i32
    %14 = arith.extui %13 : i1 to i32
    %c0_i32_11 = arith.constant 0 : i32
    %15 = arith.cmpi ne, %14, %c0_i32_11 : i32
    scf.if %15 {
      %c0_12 = arith.constant 0 : index
      %c0_13 = arith.constant 0 : index
      %16 = vector.load %arg3[%c0_12, %c0_13] : memref<4x4xf32, #tpu.memory_space<vmem>>, vector<4x4xf32>
      %cst_14 = arith.constant 0.000000e+00 : f32
      %17 = vector.broadcast %cst_14 : f32 to vector<4x1xf32>
      %cst_15 = arith.constant 0.000000e+00 : f32
      %18 = vector.broadcast %cst_15 : f32 to vector<4x4xf32>
      %c0_16 = arith.constant 0 : index
      %c0_17 = arith.constant 0 : index
      %19 = vector.load %arg6[%c0_16, %c0_17] : memref<8x1xf32, #tpu.memory_space<vmem>>, vector<4x1xf32>
      %20 = arith.addf %17, %19 : vector<4x1xf32>
      %c0_18 = arith.constant 0 : index
      %c0_19 = arith.constant 0 : index
      %21 = vector.load %arg7[%c0_18, %c0_19] : memref<8x8xf32, #tpu.memory_space<vmem>>, vector<4x4xf32>
      %22 = arith.addf %18, %21 : vector<4x4xf32>
      %c4 = arith.constant 4 : index
      %c0_20 = arith.constant 0 : index
      %23 = vector.load %arg6[%c4, %c0_20] : memref<8x1xf32, #tpu.memory_space<vmem>>, vector<4x1xf32>
      %24 = arith.addf %20, %23 : vector<4x1xf32>
      %c4_21 = arith.constant 4 : index
      %c4_22 = arith.constant 4 : index
      %25 = vector.load %arg7[%c4_21, %c4_22] : memref<8x8xf32, #tpu.memory_space<vmem>>, vector<4x4xf32>
      %26 = arith.addf %22, %25 : vector<4x4xf32>
      %cst_23 = arith.constant dense<0.000000e+00> : vector<4x1xf32>
      %27 = tpu.matmul %16, %24, %cst_23 {dimension_numbers = #tpu.dot_dimension_numbers<[1], [0], [0], [1], [0, 0, 1, 1], [], []>} : vector<4x4xf32>, vector<4x1xf32>, vector<4x1xf32> -> vector<4x1xf32>
      %cst_24 = arith.constant dense<0.000000e+00> : vector<4x4xf32>
      %28 = tpu.matmul %16, %26, %cst_24 {dimension_numbers = #tpu.dot_dimension_numbers<[1], [0], [0], [1], [0, 0, 1, 1], [], []>} : vector<4x4xf32>, vector<4x4xf32>, vector<4x4xf32> -> vector<4x4xf32>
      %29 = arith.mulf %28, %16 : vector<4x4xf32>
      %cst_25 = arith.constant dense<0.000000e+00> : vector<4xf32>
      %30 = vector.multi_reduction <add>, %29, %cst_25 [1] : vector<4x4xf32> to vector<4xf32>
      %31 = vector.shape_cast %30 : vector<4xf32> to vector<4x1xf32>
      %32 = vector.shape_cast %27 : vector<4x1xf32> to vector<1x4x1xf32>
      %c0_26 = arith.constant 0 : index
      %c0_27 = arith.constant 0 : index
      %c0_28 = arith.constant 0 : index
      %33 = vector.load %arg4[%c0_26, %c0_27, %c0_28] : memref<1x4x1xf32, #tpu.memory_space<vmem>>, vector<1x4x1xf32>
      tpu.vector_store %arg4[%c0_26, %c0_27, %c0_28], %32 {strides = array<i32>} : memref<1x4x1xf32, #tpu.memory_space<vmem>>, vector<1x4x1xf32>,
      %34 = vector.shape_cast %31 : vector<4x1xf32> to vector<1x4x1xf32>
      %c0_29 = arith.constant 0 : index
      %c0_30 = arith.constant 0 : index
      %c0_31 = arith.constant 0 : index
      %35 = vector.load %arg5[%c0_29, %c0_30, %c0_31] : memref<1x4x1xf32, #tpu.memory_space<vmem>>, vector<1x4x1xf32>
      tpu.vector_store %arg5[%c0_29, %c0_30, %c0_31], %34 {strides = array<i32>} : memref<1x4x1xf32, #tpu.memory_space<vmem>>, vector<1x4x1xf32>,
    } else {
    }
    return
  }
  func.func @transform_0(%arg0: i32, %arg1: i32) -> (i32, i32) {
    %c0_i32 = arith.constant 0 : i32
    return %arg0, %arg1 : i32, i32
  }
  func.func @transform_1(%arg0: i32, %arg1: i32) -> (i32, i32) {
    %c0_i32 = arith.constant 0 : i32
    %c0_i32_0 = arith.constant 0 : i32
    %c0_i32_1 = arith.constant 0 : i32
    return %c0_i32, %c0_i32_0 : i32, i32
  }
  func.func @transform_2(%arg0: i32, %arg1: i32) -> (i32, i32, i32) {
    %c0_i32 = arith.constant 0 : i32
    %c0_i32_0 = arith.constant 0 : i32
    %c0_i32_1 = arith.constant 0 : i32
    return %arg0, %c0_i32, %c0_i32_0 : i32, i32, i32
  }
  func.func @transform_3(%arg0: i32, %arg1: i32) -> (i32, i32, i32) {
    %c0_i32 = arith.constant 0 : i32
    %c0_i32_0 = arith.constant 0 : i32
    %c0_i32_1 = arith.constant 0 : i32
    return %arg0, %c0_i32, %c0_i32_0 : i32, i32, i32
  }
}

module attributes {stable_mosaic.version = 11 : i64} {
  func.func @_proj_linear_kernel(%arg0: i32, %arg1: memref<36x24xf32, #tpu.memory_space<vmem>>, %arg2: memref<36x36xf32, #tpu.memory_space<vmem>>, %arg3: memref<36x1xf32, #tpu.memory_space<vmem>>, %arg4: memref<36x128xf32, #tpu.memory_space<vmem>>, %arg5: memref<24x128xf32, #tpu.memory_space<vmem>>) attributes {dimension_semantics = [#tpu.dimension_semantics<parallel>], iteration_bounds = array<i64: 1>, scalar_prefetch = 0 : i64, scratch_operands = 0 : i64, tpu.core_type = #tpu.core_type<tc>, window_params = [{transform_indices = @transform_0, window_bounds = array<i64: 36, 24>}, {pipeline_mode = #tpu.pipeline_mode<synchronous>, transform_indices = @transform_1, window_bounds = array<i64: 36, 36>}, {pipeline_mode = #tpu.pipeline_mode<synchronous>, transform_indices = @transform_2, window_bounds = array<i64: 36, 1>}, {pipeline_mode = #tpu.pipeline_mode<synchronous>, transform_indices = @transform_3, window_bounds = array<i64: 36, 128>}, {transform_indices = @transform_4, window_bounds = array<i64: 24, 128>}]} {
    %c0 = arith.constant 0 : index
    %c0_0 = arith.constant 0 : index
    %0 = vector.load %arg2[%c0, %c0_0] : memref<36x36xf32, #tpu.memory_space<vmem>>, vector<36x36xf32>
    %c0_1 = arith.constant 0 : index
    %c0_2 = arith.constant 0 : index
    %1 = vector.load %arg1[%c0_1, %c0_2] : memref<36x24xf32, #tpu.memory_space<vmem>>, vector<36x24xf32>
    %cst = arith.constant dense<0.000000e+00> : vector<36x24xf32>
    %2 = tpu.matmul %0, %1, %cst {dimension_numbers = #tpu.dot_dimension_numbers<[1], [0], [0], [1], [0, 0, 1, 1], [], []>} : vector<36x36xf32>, vector<36x24xf32>, vector<36x24xf32> -> vector<36x24xf32>
    %c0_3 = arith.constant 0 : index
    %c0_4 = arith.constant 0 : index
    %3 = vector.load %arg3[%c0_3, %c0_4] : memref<36x1xf32, #tpu.memory_space<vmem>>, vector<36x1xf32>
    %4 = vector.broadcast %3 : vector<36x1xf32> to vector<36x24xf32>
    %5 = arith.addf %2, %4 : vector<36x24xf32>
    %cst_5 = arith.constant 0.000000e+00 : f32
    %6 = vector.broadcast %cst_5 : f32 to vector<36x24xf32>
    %7 = arith.maximumf %5, %6 : vector<36x24xf32>
    %c0_6 = arith.constant 0 : index
    %c0_7 = arith.constant 0 : index
    %8 = vector.load %arg4[%c0_6, %c0_7] : memref<36x128xf32, #tpu.memory_space<vmem>>, vector<36x128xf32>
    %cst_8 = arith.constant dense<0.000000e+00> : vector<24x128xf32>
    %9 = tpu.matmul %7, %8, %cst_8 {dimension_numbers = #tpu.dot_dimension_numbers<[0], [0], [1], [1], [0, 1, 1, 1], [], []>} : vector<36x24xf32>, vector<36x128xf32>, vector<24x128xf32> -> vector<24x128xf32>
    %c0_9 = arith.constant 0 : index
    %c0_10 = arith.constant 0 : index
    %10 = vector.load %arg5[%c0_9, %c0_10] : memref<24x128xf32, #tpu.memory_space<vmem>>, vector<24x128xf32>
    tpu.vector_store %arg5[%c0_9, %c0_10], %9 {strides = array<i32>} : memref<24x128xf32, #tpu.memory_space<vmem>>, vector<24x128xf32>,
    return
  }
  func.func @transform_0(%arg0: i32) -> (i32, i32) {
    %c0_i32 = arith.constant 0 : i32
    %c0_i32_0 = arith.constant 0 : i32
    return %c0_i32, %arg0 : i32, i32
  }
  func.func @transform_1(%arg0: i32) -> (i32, i32) {
    %c0_i32 = arith.constant 0 : i32
    %c0_i32_0 = arith.constant 0 : i32
    %c0_i32_1 = arith.constant 0 : i32
    return %c0_i32, %c0_i32_0 : i32, i32
  }
  func.func @transform_2(%arg0: i32) -> (i32, i32) {
    %c0_i32 = arith.constant 0 : i32
    %c0_i32_0 = arith.constant 0 : i32
    %c0_i32_1 = arith.constant 0 : i32
    return %c0_i32, %c0_i32_0 : i32, i32
  }
  func.func @transform_3(%arg0: i32) -> (i32, i32) {
    %c0_i32 = arith.constant 0 : i32
    %c0_i32_0 = arith.constant 0 : i32
    %c0_i32_1 = arith.constant 0 : i32
    return %c0_i32, %c0_i32_0 : i32, i32
  }
  func.func @transform_4(%arg0: i32) -> (i32, i32) {
    %c0_i32 = arith.constant 0 : i32
    %c0_i32_0 = arith.constant 0 : i32
    return %arg0, %c0_i32 : i32, i32
  }
}

</mosaic_0001>

<llo_original>
// kernel: decoder_projection_forward.2
$region0: #{decoder_projection_forward.2}
  #allocation0 [shape = 'u32[]', space=smem, size = 0x4, offset = 0x4, fixed_abs, tag = 'smem constant byte address 0x4 - core index']
  #allocation1 [shape = 'u32[144,128]{1,0:T(1,128)}', space=vmem, size = 0x12000, scoped, tag = 'internal scratch']
  #allocation2 [shape = 'f32[8,1]{1,0:T(8,128)}', space=vmem, size = 0x1000, scoped, tag = 'scratch operand']
  #allocation3 [shape = 'f32[8,8]{1,0:T(8,128)}', space=vmem, size = 0x1000, scoped, tag = 'scratch operand']
  %s0 = inlined_call_operand.vmem [shape: f32[8,256], index: 0, kind: input, shape index: {}]
  %s1 = inlined_call_operand.vmem [shape: f32[4,4], index: 1, kind: input, shape index: {}]
  %s2 = inlined_call_operand.vmem [shape: f32[1,4,1], index: 2, kind: output, shape index: {0}]
  %s3 = inlined_call_operand.vmem [shape: f32[1,4,1], index: 3, kind: output, shape index: {1}]
  %4 = xla_tuple %s2, %s3
  %s5 = sld [smem:[#allocation0]]
  $region57: #{decoder_projection_forward.2} parent=0
    _
  %s7 = ssub.s32 1, %s5
  %s8 = scalar_select 0, %s7, %s5
  loop: start=0, step=1, limit=4
  $region2: #{decoder_projection_forward.2} parent=0 // loop_pre_header
    _
  $region3: #{decoder_projection_forward.2} parent=0 // loop_header
    %s10 = sphi 0, %s14
    %p11 = scmp.ge.s32.totalorder %s10, 4
    %s17 = sphi 0, %s29
    %s18 = sphi 0, %s25
    %s19 = sphi 0, %s17
    %s20 = sphi 0, %s18
    %s21 = sphi 0, %s19
    %s22 = sphi 0, %s20
    %s34 = sphi 0, %s36
    %s37 = sphi 0, %s34
    %s38 = sphi 0, %s37
    %s54 = sphi 0, %s38
    %s58 = sphi 0, %s58
    %s60 = sphi 0, %s58
    %s61 = sphi 0, %s60
    %s75 = sphi 0, %s61
    %s81 = sphi 0, %s83
    %s84 = sphi 0, %s81
    %s85 = sphi 0, %s84
    %s101 = sphi 0, %s85
    %s107 = sphi 0, %s109
    %s110 = sphi 0, %s107
    %s111 = sphi 0, %s110
    %s127 = sphi 0, %s111
  $region4: #{decoder_projection_forward.2} parent=0 // loop_header_branch
    %13 = sbr.rel (%p11) target = $region8
  $region5: #{decoder_projection_forward.2} parent=0 // loop_body
    %s15 = ssub.s32 %s10, 1
    %s16 = ssub.s32 %s10, 2
    %s23 = sadd.s32 1, %s18
    %p24 = scmp.ge.s32.totalorder %s23, 2
    %s25 = scalar_select %p24, 0, %s23
    %s26 = sadd.s32 1, %s17
    %s27 = scalar_select %p24, %s26, %s17
    %p28 = scmp.ge.s32.totalorder %s27, 1
    %s29 = scalar_select %p28, 0, %s27
    %s30 = ssub.s32 %s17, %s29
    %s31 = ssub.s32 %s18, %s25
    %s32 = sor.u32 %s30, %s31
    %p33 = scmp.eq.s32.totalorder %s32, 0
    %s35 = sadd.s32 %s34, 1
    %s36 = scalar_select %p33, %s34, %s35
    %p39 = pneg %p33
    %p40 = scmp.eq.s32.totalorder %s10, 1
    %p41 = por %p39, %p40
    %p42 = scmp.ne.s32.totalorder %s34, %s37
    %p43 = scmp.eq.s32.totalorder %s10, 0
    %p44 = por %p42, %p43
    %p45 = scmp.ne.s32.totalorder %s34, %s37
    %p46 = scmp.eq.s32.totalorder %s15, 1
    %p47 = por %p45, %p46
    %p48 = scmp.ne.s32.totalorder %s37, %s38
    %p49 = scmp.eq.s32.totalorder %s15, 0
    %p50 = por %p48, %p49
    %p51 = scmp.ne.s32.totalorder %s37, %s38
    %p52 = scmp.eq.s32.totalorder %s16, 1
    %p53 = por %p51, %p52
    %p55 = scmp.ne.s32.totalorder %s38, %s54
    %p56 = scmp.eq.s32.totalorder %s16, 0
    %p57 = por %p55, %p56
    %s59 = sadd.s32 %s58, 1
    %p62 = scmp.eq.s32.totalorder %s10, 1
    %p63 = scmp.ne.s32.totalorder %s58, %s60
    %p64 = scmp.eq.s32.totalorder %s10, 0
    %p65 = por %p63, %p64
    %p66 = scmp.ne.s32.totalorder %s58, %s60
    %p67 = scmp.eq.s32.totalorder %s15, 1
    %p68 = por %p66, %p67
    %p69 = scmp.ne.s32.totalorder %s60, %s61
    %p70 = scmp.eq.s32.totalorder %s15, 0
    %p71 = por %p69, %p70
    %p72 = scmp.ne.s32.totalorder %s60, %s61
    %p73 = scmp.eq.s32.totalorder %s16, 1
    %p74 = por %p72, %p73
    %p76 = scmp.ne.s32.totalorder %s61, %s75
    %p77 = scmp.eq.s32.totalorder %s16, 0
    %p78 = por %p76, %p77
    %s79 = ssub.s32 %s17, %s29
    %p80 = scmp.eq.s32.totalorder %s79, 0
    %s82 = sadd.s32 %s81, 1
    %s83 = scalar_select %p80, %s81, %s82
    %p86 = pneg %p80
    %p87 = scmp.eq.s32.totalorder %s10, 1
    %p88 = por %p86, %p87
    %p89 = scmp.ne.s32.totalorder %s81, %s84
    %p90 = scmp.eq.s32.totalorder %s10, 0
    %p91 = por %p89, %p90
    %p92 = scmp.ne.s32.totalorder %s81, %s84
    %p93 = scmp.eq.s32.totalorder %s15, 1
    %p94 = por %p92, %p93
    %p95 = scmp.ne.s32.totalorder %s84, %s85
    %p96 = scmp.eq.s32.totalorder %s15, 0
    %p97 = por %p95, %p96
    %p98 = scmp.ne.s32.totalorder %s84, %s85
    %p99 = scmp.eq.s32.totalorder %s16, 1
    %p100 = por %p98, %p99
    %p102 = scmp.ne.s32.totalorder %s85, %s101
    %p103 = scmp.eq.s32.totalorder %s16, 0
    %p104 = por %p102, %p103
    %s105 = ssub.s32 %s17, %s29
    %p106 = scmp.eq.s32.totalorder %s105, 0
    %s108 = sadd.s32 %s107, 1
    %s109 = scalar_select %p106, %s107, %s108
    %p112 = pneg %p106
    %p113 = scmp.eq.s32.totalorder %s10, 1
    %p114 = por %p112, %p113
    %p115 = scmp.ne.s32.totalorder %s107, %s110
    %p116 = scmp.eq.s32.totalorder %s10, 0
    %p117 = por %p115, %p116
    %p118 = scmp.ne.s32.totalorder %s107, %s110
    %p119 = scmp.eq.s32.totalorder %s15, 1
    %p120 = por %p118, %p119
    %p121 = scmp.ne.s32.totalorder %s110, %s111
    %p122 = scmp.eq.s32.totalorder %s15, 0
    %p123 = por %p121, %p122
    %p124 = scmp.ne.s32.totalorder %s110, %s111
    %p125 = scmp.eq.s32.totalorder %s16, 1
    %p126 = por %p124, %p125
    %p128 = scmp.ne.s32.totalorder %s111, %s127
    %p129 = scmp.eq.s32.totalorder %s16, 0
    %p130 = por %p128, %p129
    %p131 = scmp.le.s32.totalorder 1, %s10
    %p132 = scmp.lt.s32.totalorder %s10, 3
    %p133 = pnand %p131, %p132
    %p134 = pneg %p133
    // Predicated region
    $region9: #{decoder_projection_forward.2} parent=5 // pred_check
      _
    $region10: #{decoder_projection_forward.2} parent=5 // pred_check_branch
      %136 = sbr.rel (%p133) target = $region12
    $region11: #{decoder_projection_forward.2} parent=5 // pred_region
      %s137 = ssub.s32 %s10, 1
      // Predicated region
      $region13: #{decoder_projection_forward.2} parent=11 // pred_check
        %p138 = pneg %p71
      $region14: #{decoder_projection_forward.2} parent=11 // pred_check_branch
        %140 = sbr.rel (%p138) target = $region16
      $region15: #{decoder_projection_forward.2} parent=11 // pred_region
        _
      $region16: #{decoder_projection_forward.2} parent=11 // pred_fallthru
        _
    $region12: #{decoder_projection_forward.2} parent=5 // pred_fallthru
      _
    %p141 = scmp.lt.s32.totalorder %s10, 2
    // Predicated region
    $region17: #{decoder_projection_forward.2} parent=5 // pred_check
      %p142 = pneg %p141
    $region18: #{decoder_projection_forward.2} parent=5 // pred_check_branch
      %144 = sbr.rel (%p142) target = $region20
    $region19: #{decoder_projection_forward.2} parent=5 // pred_region
      // Predicated region
      $region21: #{decoder_projection_forward.2} parent=19 // pred_check
        %p145 = pneg %p44
      $region22: #{decoder_projection_forward.2} parent=19 // pred_check_branch
        %147 = sbr.rel (%p145) target = $region24
      $region23: #{decoder_projection_forward.2} parent=19 // pred_region
        %p148 = scmp.lt.s32.totalorder %s17, 0
        %s149 = scalar_select %p148, %s17, 0
        %p150 = scmp.lt.s32.totalorder %s18, 1
        %s151 = scalar_select %p150, %s18, 1
        %s152 = smul.addr %s149, 2
        %s153 = sadd.s32 %s151, %s152
        %s154 = smul.addr %s153, 8
        %s155 = scalar_lea.vmem %s0, %s154
      $region24: #{decoder_projection_forward.2} parent=19 // pred_fallthru
        _
    $region20: #{decoder_projection_forward.2} parent=5 // pred_fallthru
      _
    %p156 = scmp.le.s32.totalorder 1, %s10
    %p157 = scmp.lt.s32.totalorder %s10, 3
    %p158 = pnand %p156, %p157
    %p159 = pneg %p158
    // Predicated region
    $region25: #{decoder_projection_forward.2} parent=5 // pred_check
      _
    $region26: #{decoder_projection_forward.2} parent=5 // pred_check_branch
      %161 = sbr.rel (%p158) target = $region28
    $region27: #{decoder_projection_forward.2} parent=5 // pred_region
      %s162 = ssub.s32 %s10, 1
      %p163 = scmp.lt.s32.totalorder %s19, 0
      %s164 = scalar_select %p163, %s19, 0
      %p165 = scmp.lt.s32.totalorder %s20, 1
      %s166 = scalar_select %p165, %s20, 1
      %s167 = smul.addr %s164, 2
      %s168 = sadd.s32 %s166, %s167
      %s169 = smul.addr %s168, 8
      %s170 = scalar_lea.vmem %s0, %s169
      %p171 = pneg %p50
      %p172 = pneg %p47
      %p173 = pneg %p71
      %p174 = pneg %p68
      %p175 = pneg %p97
      %p176 = pneg %p94
      %p177 = scmp.lt.s32.totalorder %s19, 0
      %s178 = scalar_select %p177, %s19, 0
      %s179 = smul.addr %s178, 4
      %s180 = scalar_lea.vmem %s2, %s179
      %p181 = pneg %p123
      %p182 = pneg %p120
      %p183 = scmp.lt.s32.totalorder %s19, 0
      %s184 = scalar_select %p183, %s19, 0
      %s185 = smul.addr %s184, 4
      %s186 = scalar_lea.vmem %s3, %s185
      %p187 = scmp.lt.s32.totalorder %s19, 0
      %s188 = scalar_select %p187, %s19, 0
      %p189 = scmp.lt.s32.totalorder %s20, 1
      %s190 = scalar_select %p189, %s20, 1
      %s191 = smul.addr %s188, 2
      %s192 = sadd.s32 %s190, %s191
      %s193 = smul.addr %s192, 8
      %s194 = scalar_lea.vmem %s0, %s193
      %p195 = scmp.lt.s32.totalorder %s19, 0
      %s196 = scalar_select %p195, %s19, 0
      %s197 = smul.addr %s196, 4
      %s198 = scalar_lea.vmem %s2, %s197
      %p199 = scmp.lt.s32.totalorder %s19, 0
      %s200 = scalar_select %p199, %s19, 0
      %s201 = smul.addr %s200, 4
      %s202 = scalar_lea.vmem %s3, %s201
      %p203 = scmp.eq.s32.totalorder %s20, 0
      // Predicated region
      $region29: #{decoder_projection_forward.2} parent=27 // pred_check
        %p204 = pneg %p203
      $region30: #{decoder_projection_forward.2} parent=27 // pred_check_branch
        %206 = sbr.rel (%p204) target = $region32
      $region31: #{decoder_projection_forward.2} parent=27 // pred_region
        %vm207 = vcmask 7168
        %208 = vst.msk [vmem:[#allocation2] sm:$0xff] %vm207, 0.0
        %vm209 = vcmask 64512
        %210 = vst.msk [vmem:[#allocation3] sm:$0xff] %vm209, 0.0
      $region32: #{decoder_projection_forward.2} parent=27 // pred_fallthru
        _
      %v211 = vld [vmem:[%s194] sm:$0xff]
      %v212 = vld [vmem:[#allocation2] sm:$0xff]
      %213 = vadd.xlane.f32.xlu0 %v211
      %v214 = vpop.xlane.xlu0 %213
      %v215 = vadd.f32 %v212, %v214
      %vm216 = vcmask 7168
      %217 = vst.msk [vmem:[#allocation2] sm:$0xff] %vm216, %v215
      %v218 = vld [vmem:[#allocation3] sm:$0xff]
      %219 = vmatprep.subr.mxu0 0.0
      %220 = vmatpush1.xpose.msra.mxu0 0.0
      %221 = vmatprep.subr.mxu0 0.0
      %222 = vmatpush1.xpose.msra.mxu0 0.0
      %223 = vmatprep.subr.mxu0 0.0
      %224 = vmatpush1.xpose.msra.mxu0 0.0
      %225 = vmatprep.subr.mxu0 0.0
      %226 = vmatpush1.xpose.msra.mxu0 0.0
      %227 = vmatprep.subr.mxu0 0.0
      %228 = vmatpush1.xpose.msra.mxu0 0.0
      %229 = vmatprep.subr.mxu0 0.0
      %230 = vmatpush1.xpose.msra.mxu0 0.0
      %231 = vmatprep.subr.mxu0 0.0
      %232 = vmatpush1.xpose.msra.mxu0 0.0
      %233 = vmatprep.subr.mxu0 0.0
      %234 = vmatpush1.xpose.msra.mxu0 0.0
      %235 = vmatprep.subr.mxu0 0.0
      %236 = vmatpush1.xpose.msra.mxu0 0.0
      %237 = vmatprep.subr.mxu0 0.0
      %238 = vmatpush1.xpose.msra.mxu0 0.0
      %239 = vmatprep.subr.mxu0 0.0
      %240 = vmatpush1.xpose.msra.mxu0 0.0
      %241 = vmatprep.subr.mxu0 0.0
      %242 = vmatpush1.xpose.msra.mxu0 0.0
      %243 = vmatprep.subr.mxu0 0.0
      %244 = vmatpush1.xpose.msra.mxu0 0.0
      %245 = vmatprep.subr.mxu0 0.0
      %246 = vmatpush1.xpose.msra.mxu0 0.0
      %247 = vmatprep.subr.mxu0 0.0
      %248 = vmatpush1.xpose.msra.mxu0 0.0
      %249 = vmatprep.subr.mxu0 0.0
      %250 = vmatpush1.xpose.msra.mxu0 %v211
      %251 = vmatprep.subr.mxu0 0.0
      %252 = vmatpush2.xpose.msra.mxu0 0.0
      %253 = vmatprep.subr.mxu0 0.0
      %254 = vmatpush2.xpose.msra.mxu0 0.0
      %255 = vmatprep.subr.mxu0 0.0
      %256 = vmatpush2.xpose.msra.mxu0 0.0
      %257 = vmatprep.subr.mxu0 0.0
      %258 = vmatpush2.xpose.msra.mxu0 0.0
      %259 = vmatprep.subr.mxu0 0.0
      %260 = vmatpush2.xpose.msra.mxu0 0.0
      %261 = vmatprep.subr.mxu0 0.0
      %262 = vmatpush2.xpose.msra.mxu0 0.0
      %263 = vmatprep.subr.mxu0 0.0
      %264 = vmatpush2.xpose.msra.mxu0 0.0
      %265 = vmatprep.subr.mxu0 0.0
      %266 = vmatpush2.xpose.msra.mxu0 0.0
      %267 = vmatprep.subr.mxu0 0.0
      %268 = vmatpush2.xpose.msra.mxu0 0.0
      %269 = vmatprep.subr.mxu0 0.0
      %270 = vmatpush2.xpose.msra.mxu0 0.0
      %271 = vmatprep.subr.mxu0 0.0
      %272 = vmatpush2.xpose.msra.mxu0 0.0
      %273 = vmatprep.subr.mxu0 0.0
      %274 = vmatpush2.xpose.msra.mxu0 0.0
      %275 = vmatprep.subr.mxu0 0.0
      %276 = vmatpush2.xpose.msra.mxu0 0.0
      %277 = vmatprep.subr.mxu0 0.0
      %278 = vmatpush2.xpose.msra.mxu0 0.0
      %279 = vmatprep.subr.mxu0 0.0
      %280 = vmatpush2.xpose.msra.mxu0 0.0
      %281 = vmatprep.subr.mxu0 0.0
      %282 = vmatpush2.xpose.msra.mxu0 0.0
      %283 = vmatprep.mubr.f32.mxu0 0.0
      %284 = vmatmul.mubr.f32.gmra.mxu0 %v211
      %v285 = vpop.f32.mrf.mxu0
      %v286 = vadd.f32 0.0, %v285
      %v287 = vpop.f32.mrf.mxu0
      %288 = vdwg.mxu0
      %v289 = vadd.f32 %v218, %v286
      %vm290 = vcmask 64512
      %291 = vst.msk [vmem:[#allocation3] sm:$0xff] %vm290, %v289
      %p292 = scmp.eq.s32.totalorder %s20, 1
      // Predicated region
      $region33: #{decoder_projection_forward.2} parent=27 // pred_check
        %p293 = pneg %p292
      $region34: #{decoder_projection_forward.2} parent=27 // pred_check_branch
        %295 = sbr.rel (%p293) target = $region36
      $region35: #{decoder_projection_forward.2} parent=27 // pred_region
        %v296 = vld [vmem:[%s1] sm:$0xf]
        %v297 = vld [vmem:[#allocation2] sm:$0xf]
        %v298 = vadd.f32 %v297, 0.0
        %v299 = vld [vmem:[#allocation3] sm:$0xf]
        %v300 = vadd.f32 %v299, 0.0
        %v301 = vld [vmem:[#allocation2 + $0x4] sm:$0xf]
        %v302 = vadd.f32 %v298, %v301
        %v303 = vld [vmem:[#allocation3 + $0x4] sm:$0xf]
        %305 = vrot.lane.b32.xlu0 %v303, 124
        %v306 = vpop.permute.xlu0 %305
        %v308 = vadd.f32 %v300, %v306
        %vm309 = vcmask 31744
        %v311 = vsel %vm309, %v296, 0
        %vm313 = vcmask 1043456
        %v315 = vsel %vm313, %v302, 0
        %317 = vmatprep.subr.mxu0 0.0
        %318 = vmatpush1.msra.mxu0 0.0
        %319 = vmatprep.subr.mxu0 0.0
        %320 = vmatpush1.msra.mxu0 0.0
        %321 = vmatprep.subr.mxu0 0.0
        %322 = vmatpush1.msra.mxu0 0.0
        %323 = vmatprep.subr.mxu0 0.0
        %324 = vmatpush1.msra.mxu0 0.0
        %325 = vmatprep.subr.mxu0 0.0
        %326 = vmatpush1.msra.mxu0 0.0
        %327 = vmatprep.subr.mxu0 0.0
        %328 = vmatpush1.msra.mxu0 0.0
        %329 = vmatprep.subr.mxu0 0.0
        %330 = vmatpush1.msra.mxu0 0.0
        %331 = vmatprep.subr.mxu0 0.0
        %332 = vmatpush1.msra.mxu0 0.0
        %333 = vmatprep.subr.mxu0 0.0
        %334 = vmatpush1.msra.mxu0 0.0
        %335 = vmatprep.subr.mxu0 0.0
        %336 = vmatpush1.msra.mxu0 0.0
        %337 = vmatprep.subr.mxu0 0.0
        %338 = vmatpush1.msra.mxu0 0.0
        %339 = vmatprep.subr.mxu0 0.0
        %340 = vmatpush1.msra.mxu0 0.0
        %341 = vmatprep.subr.mxu0 0.0
        %342 = vmatpush1.msra.mxu0 0.0
        %343 = vmatprep.subr.mxu0 0.0
        %344 = vmatpush1.msra.mxu0 0.0
        %345 = vmatprep.subr.mxu0 0.0
        %346 = vmatpush1.msra.mxu0 0.0
        %347 = vmatprep.subr.mxu0 0.0
        %348 = vmatpush1.msra.mxu0 %v315
        %349 = vmatprep.subr.mxu0 0.0
        %350 = vmatpush2.msra.mxu0 0.0
        %351 = vmatprep.subr.mxu0 0.0
        %352 = vmatpush2.msra.mxu0 0.0
        %353 = vmatprep.subr.mxu0 0.0
        %354 = vmatpush2.msra.mxu0 0.0
        %355 = vmatprep.subr.mxu0 0.0
        %356 = vmatpush2.msra.mxu0 0.0
        %357 = vmatprep.subr.mxu0 0.0
        %358 = vmatpush2.msra.mxu0 0.0
        %359 = vmatprep.subr.mxu0 0.0
        %360 = vmatpush2.msra.mxu0 0.0
        %361 = vmatprep.subr.mxu0 0.0
        %362 = vmatpush2.msra.mxu0 0.0
        %363 = vmatprep.subr.mxu0 0.0
        %364 = vmatpush2.msra.mxu0 0.0
        %365 = vmatprep.subr.mxu0 0.0
        %366 = vmatpush2.msra.mxu0 0.0
        %367 = vmatprep.subr.mxu0 0.0
        %368 = vmatpush2.msra.mxu0 0.0
        %369 = vmatprep.subr.mxu0 0.0
        %370 = vmatpush2.msra.mxu0 0.0
        %371 = vmatprep.subr.mxu0 0.0
        %372 = vmatpush2.msra.mxu0 0.0
        %373 = vmatprep.subr.mxu0 0.0
        %374 = vmatpush2.msra.mxu0 0.0
        %375 = vmatprep.subr.mxu0 0.0
        %376 = vmatpush2.msra.mxu0 0.0
        %377 = vmatprep.subr.mxu0 0.0
        %378 = vmatpush2.msra.mxu0 0.0
        %379 = vmatprep.subr.mxu0 0.0
        %380 = vmatpush2.msra.mxu0 0.0
        %381 = vmatprep.mubr.f32.mxu0 0.0
        %382 = vmatmul.mubr.f32.gmra.mxu0 %v311
        %v383 = vpop.f32.mrf.mxu0
        %v384 = vadd.f32 0.0, %v383
        %v385 = vpop.f32.mrf.mxu0
        %386 = vdwg.mxu0
        %v388 = vsel %vm313, %v308, 0
        %390 = vmatprep.subr.mxu0 0.0
        %391 = vmatpush1.msra.mxu0 0.0
        %392 = vmatprep.subr.mxu0 0.0
        %393 = vmatpush1.msra.mxu0 0.0
        %394 = vmatprep.subr.mxu0 0.0
        %395 = vmatpush1.msra.mxu0 0.0
        %396 = vmatprep.subr.mxu0 0.0
        %397 = vmatpush1.msra.mxu0 0.0
        %398 = vmatprep.subr.mxu0 0.0
        %399 = vmatpush1.msra.mxu0 0.0
        %400 = vmatprep.subr.mxu0 0.0
        %401 = vmatpush1.msra.mxu0 0.0
        %402 = vmatprep.subr.mxu0 0.0
        %403 = vmatpush1.msra.mxu0 0.0
        %404 = vmatprep.subr.mxu0 0.0
        %405 = vmatpush1.msra.mxu0 0.0
        %406 = vmatprep.subr.mxu0 0.0
        %407 = vmatpush1.msra.mxu0 0.0
        %408 = vmatprep.subr.mxu0 0.0
        %409 = vmatpush1.msra.mxu0 0.0
        %410 = vmatprep.subr.mxu0 0.0
        %411 = vmatpush1.msra.mxu0 0.0
        %412 = vmatprep.subr.mxu0 0.0
        %413 = vmatpush1.msra.mxu0 0.0
        %414 = vmatprep.subr.mxu0 0.0
        %415 = vmatpush1.msra.mxu0 0.0
        %416 = vmatprep.subr.mxu0 0.0
        %417 = vmatpush1.msra.mxu0 0.0
        %418 = vmatprep.subr.mxu0 0.0
        %419 = vmatpush1.msra.mxu0 0.0
        %420 = vmatprep.subr.mxu0 0.0
        %421 = vmatpush1.msra.mxu0 %v388
        %422 = vmatprep.subr.mxu0 0.0
        %423 = vmatpush2.msra.mxu0 0.0
        %424 = vmatprep.subr.mxu0 0.0
        %425 = vmatpush2.msra.mxu0 0.0
        %426 = vmatprep.subr.mxu0 0.0
        %427 = vmatpush2.msra.mxu0 0.0
        %428 = vmatprep.subr.mxu0 0.0
        %429 = vmatpush2.msra.mxu0 0.0
        %430 = vmatprep.subr.mxu0 0.0
        %431 = vmatpush2.msra.mxu0 0.0
        %432 = vmatprep.subr.mxu0 0.0
        %433 = vmatpush2.msra.mxu0 0.0
        %434 = vmatprep.subr.mxu0 0.0
        %435 = vmatpush2.msra.mxu0 0.0
        %436 = vmatprep.subr.mxu0 0.0
        %437 = vmatpush2.msra.mxu0 0.0
        %438 = vmatprep.subr.mxu0 0.0
        %439 = vmatpush2.msra.mxu0 0.0
        %440 = vmatprep.subr.mxu0 0.0
        %441 = vmatpush2.msra.mxu0 0.0
        %442 = vmatprep.subr.mxu0 0.0
        %443 = vmatpush2.msra.mxu0 0.0
        %444 = vmatprep.subr.mxu0 0.0
        %445 = vmatpush2.msra.mxu0 0.0
        %446 = vmatprep.subr.mxu0 0.0
        %447 = vmatpush2.msra.mxu0 0.0
        %448 = vmatprep.subr.mxu0 0.0
        %449 = vmatpush2.msra.mxu0 0.0
        %450 = vmatprep.subr.mxu0 0.0
        %451 = vmatpush2.msra.mxu0 0.0
        %452 = vmatprep.subr.mxu0 0.0
        %453 = vmatpush2.msra.mxu0 0.0
        %454 = vmatprep.mubr.f32.mxu0 0.0
        %455 = vmatmul.mubr.f32.gmra.mxu0 %v311
        %v456 = vpop.f32.mrf.mxu0
        %v457 = vadd.f32 0.0, %v456
        %v458 = vpop.f32.mrf.mxu0
        %459 = vdwg.mxu0
        %v460 = vmul.f32 %v457, %v296
        %vm461 = vcmask 27648
        %v462 = vsel %vm461, %v460, 0.0
        %463 = vadd.xlane.f32.xlu0 %v462
        %v464 = vpop.xlane.xlu0 %463
        %vm465 = vcmask 3072
        %466 = vst.msk [vmem:[%s198] sm:$0xf] %vm465, %v384
        %467 = vst.msk [vmem:[%s202] sm:$0xf] %vm465, %v464
      $region36: #{decoder_projection_forward.2} parent=27 // pred_fallthru
        _
      %p468 = scmp.lt.s32.totalorder %s19, 0
      %s469 = scalar_select %p468, %s19, 0
      %s470 = smul.addr %s469, 4
      %s471 = scalar_lea.vmem %s2, %s470
      %p472 = scmp.lt.s32.totalorder %s19, 0
      %s473 = scalar_select %p472, %s19, 0
      %s474 = smul.addr %s473, 4
      %s475 = scalar_lea.vmem %s3, %s474
      // Predicated region
      $region37: #{decoder_projection_forward.2} parent=27 // pred_check
        %p476 = pneg %p94
      $region38: #{decoder_projection_forward.2} parent=27 // pred_check_branch
        %478 = sbr.rel (%p476) target = $region40
      $region39: #{decoder_projection_forward.2} parent=27 // pred_region
        _
      $region40: #{decoder_projection_forward.2} parent=27 // pred_fallthru
        _
      // Predicated region
      $region41: #{decoder_projection_forward.2} parent=27 // pred_check
        %p479 = pneg %p120
      $region42: #{decoder_projection_forward.2} parent=27 // pred_check_branch
        %481 = sbr.rel (%p479) target = $region44
      $region43: #{decoder_projection_forward.2} parent=27 // pred_region
        _
      $region44: #{decoder_projection_forward.2} parent=27 // pred_fallthru
        _
      // Predicated region
      $region45: #{decoder_projection_forward.2} parent=27 // pred_check
        %p482 = pneg %p94
      $region46: #{decoder_projection_forward.2} parent=27 // pred_check_branch
        %484 = sbr.rel (%p482) target = $region48
      $region47: #{decoder_projection_forward.2} parent=27 // pred_region
        %p485 = scmp.lt.s32.totalorder %s19, 0
        %s486 = scalar_select %p485, %s19, 0
        %s487 = smul.addr %s486, 4
        %s488 = scalar_lea.vmem %s2, %s487
      $region48: #{decoder_projection_forward.2} parent=27 // pred_fallthru
        _
      // Predicated region
      $region49: #{decoder_projection_forward.2} parent=27 // pred_check
        %p489 = pneg %p120
      $region50: #{decoder_projection_forward.2} parent=27 // pred_check_branch
        %491 = sbr.rel (%p489) target = $region52
      $region51: #{decoder_projection_forward.2} parent=27 // pred_region
        %p492 = scmp.lt.s32.totalorder %s19, 0
        %s493 = scalar_select %p492, %s19, 0
        %s494 = smul.addr %s493, 4
        %s495 = scalar_lea.vmem %s3, %s494
      $region52: #{decoder_projection_forward.2} parent=27 // pred_fallthru
        _
    $region28: #{decoder_projection_forward.2} parent=5 // pred_fallthru
      _
    %p496 = scmp.le.s32.totalorder 2, %s10
    // Predicated region
    $region53: #{decoder_projection_forward.2} parent=5 // pred_check
      %p497 = pneg %p496
    $region54: #{decoder_projection_forward.2} parent=5 // pred_check_branch
      %499 = sbr.rel (%p497) target = $region56
    $region55: #{decoder_projection_forward.2} parent=5 // pred_region
      %s500 = ssub.s32 %s10, 2
    $region56: #{decoder_projection_forward.2} parent=5 // pred_fallthru
      _
  $region6: #{decoder_projection_forward.2} parent=0 // loop_footer
    %s14 = sadd.s32 1, %s10
  $region7: #{decoder_projection_forward.2} parent=0 // loop_footer_branch
    %9 = sbr.rel target = $region3
  $region8: #{decoder_projection_forward.2} parent=0 // loop_exit
    _

// kernel: decoder_projection_forward.3
$region0: #{decoder_projection_forward.3}
  #allocation0 [shape = 'u32[]', space=smem, size = 0x4, offset = 0x4, fixed_abs, tag = 'smem constant byte address 0x4 - core index']
  #allocation1 [shape = 'u32[144,128]{1,0:T(1,128)}', space=vmem, size = 0x12000, scoped, tag = 'internal scratch']
  %s0 = inlined_call_operand.vmem [shape: f32[36,24], index: 0, kind: input, shape index: {}]
  %s1 = inlined_call_operand.vmem [shape: f32[36,36], index: 1, kind: input, shape index: {}]
  %s2 = inlined_call_operand.vmem [shape: f32[36,1], index: 2, kind: input, shape index: {}]
  %s3 = inlined_call_operand.vmem [shape: f32[36,128], index: 3, kind: input, shape index: {}]
  %s4 = inlined_call_operand.vmem [shape: f32[24,128], index: 4, kind: output, shape index: {}]
  %s5 = sld [smem:[#allocation0]]
  $region26: #{decoder_projection_forward.3} parent=0
    _
  %s7 = ssub.s32 1, %s5
  %s8 = scalar_select 0, %s7, %s5
  // Predicated region
  $region2: #{decoder_projection_forward.3} parent=0 // pred_check
    _
  $region3: #{decoder_projection_forward.3} parent=0 // pred_check_branch
    %10 = sbr.rel (0) target = $region5
  $region4: #{decoder_projection_forward.3} parent=0 // pred_region
    _
  $region5: #{decoder_projection_forward.3} parent=0 // pred_fallthru
    _
  // Predicated region
  $region6: #{decoder_projection_forward.3} parent=0 // pred_check
    _
  $region7: #{decoder_projection_forward.3} parent=0 // pred_check_branch
    %12 = sbr.rel (0) target = $region9
  $region8: #{decoder_projection_forward.3} parent=0 // pred_region
    _
  $region9: #{decoder_projection_forward.3} parent=0 // pred_fallthru
    _
  // Predicated region
  $region10: #{decoder_projection_forward.3} parent=0 // pred_check
    _
  $region11: #{decoder_projection_forward.3} parent=0 // pred_check_branch
    %14 = sbr.rel (0) target = $region13
  $region12: #{decoder_projection_forward.3} parent=0 // pred_region
    _
  $region13: #{decoder_projection_forward.3} parent=0 // pred_fallthru
    _
  // Predicated region
  $region14: #{decoder_projection_forward.3} parent=0 // pred_check
    _
  $region15: #{decoder_projection_forward.3} parent=0 // pred_check_branch
    %16 = sbr.rel (0) target = $region17
  $region16: #{decoder_projection_forward.3} parent=0 // pred_region
    _
  $region17: #{decoder_projection_forward.3} parent=0 // pred_fallthru
    _
  %v17 = vld [vmem:[%s1] sm:$0xff]
  %v18 = vld [vmem:[%s1 + $0x8] sm:$0xff]
  %v19 = vld [vmem:[%s1 + $0x10] sm:$0xff]
  %v20 = vld [vmem:[%s1 + $0x18] sm:$0xff]
  %v21 = vld [vmem:[%s1 + $0x20] sm:$0xf]
  %v22 = vld [vmem:[%s0] sm:$0xff]
  %v23 = vld [vmem:[%s0 + $0x8] sm:$0xff]
  %v24 = vld [vmem:[%s0 + $0x10] sm:$0xff]
  %v25 = vld [vmem:[%s0 + $0x18] sm:$0xff]
  %v26 = vld [vmem:[%s0 + $0x20] sm:$0xf]
  %v27 = vld [vmem:[%s2] sm:$0xff]
  %v28 = vld [vmem:[%s2 + $0x8] sm:$0xff]
  %v29 = vld [vmem:[%s2 + $0x10] sm:$0xff]
  %v30 = vld [vmem:[%s2 + $0x18] sm:$0xff]
  %v31 = vld [vmem:[%s2 + $0x20] sm:$0xf]
  %33 = vset.pattern.permute.xlu0 0
  %34 = vperm.xlu0 %33, %v27
  %v35 = vpop.permute.xlu0 %34
  %38 = vset.pattern.permute.xlu0 0
  %39 = vperm.xlu0 %38, %v28
  %v40 = vpop.permute.xlu0 %39
  %43 = vset.pattern.permute.xlu0 0
  %44 = vperm.xlu0 %43, %v29
  %v45 = vpop.permute.xlu0 %44
  %48 = vset.pattern.permute.xlu0 0
  %49 = vperm.xlu0 %48, %v30
  %v50 = vpop.permute.xlu0 %49
  %53 = vset.pattern.permute.xlu0 0
  %54 = vperm.xlu0 %53, %v31
  %v55 = vpop.permute.xlu0 %54
  %vm57 = vcmask 293888
  %v59 = vsel %vm57, %v17, 0
  %v62 = vsel %vm57, %v18, 0
  %v65 = vsel %vm57, %v19, 0
  %v68 = vsel %vm57, %v20, 0
  %v71 = vsel %vm57, %v21, 0
  %vm73 = vcmask 1043456
  %v75 = vsel %vm73, %v26, 0
  %77 = vmatprep.subr.mxu0 0.0
  %78 = vmatpush1.msra.mxu0 0.0
  %79 = vmatprep.subr.mxu0 0.0
  %80 = vmatpush1.msra.mxu0 0.0
  %81 = vmatprep.subr.mxu0 0.0
  %82 = vmatpush1.msra.mxu0 0.0
  %83 = vmatprep.subr.mxu0 0.0
  %84 = vmatpush1.msra.mxu0 0.0
  %85 = vmatprep.subr.mxu0 0.0
  %86 = vmatpush1.msra.mxu0 0.0
  %87 = vmatprep.subr.mxu0 0.0
  %88 = vmatpush1.msra.mxu0 0.0
  %89 = vmatprep.subr.mxu0 0.0
  %90 = vmatpush1.msra.mxu0 0.0
  %91 = vmatprep.subr.mxu0 0.0
  %92 = vmatpush1.msra.mxu0 0.0
  %93 = vmatprep.subr.mxu0 0.0
  %94 = vmatpush1.msra.mxu0 0.0
  %95 = vmatprep.subr.mxu0 0.0
  %96 = vmatpush1.msra.mxu0 0.0
  %97 = vmatprep.subr.mxu0 0.0
  %98 = vmatpush1.msra.mxu0 0.0
  %99 = vmatprep.subr.mxu0 0.0
  %100 = vmatpush1.msra.mxu0 %v75
  %101 = vmatprep.subr.mxu0 0.0
  %102 = vmatpush1.msra.mxu0 %v25
  %103 = vmatprep.subr.mxu0 0.0
  %104 = vmatpush1.msra.mxu0 %v24
  %105 = vmatprep.subr.mxu0 0.0
  %106 = vmatpush1.msra.mxu0 %v23
  %107 = vmatprep.subr.mxu0 0.0
  %108 = vmatpush1.msra.mxu0 %v22
  %109 = vmatprep.subr.mxu0 0.0
  %110 = vmatpush2.msra.mxu0 0.0
  %111 = vmatprep.subr.mxu0 0.0
  %112 = vmatpush2.msra.mxu0 0.0
  %113 = vmatprep.subr.mxu0 0.0
  %114 = vmatpush2.msra.mxu0 0.0
  %115 = vmatprep.subr.mxu0 0.0
  %116 = vmatpush2.msra.mxu0 0.0
  %117 = vmatprep.subr.mxu0 0.0
  %118 = vmatpush2.msra.mxu0 0.0
  %119 = vmatprep.subr.mxu0 0.0
  %120 = vmatpush2.msra.mxu0 0.0
  %121 = vmatprep.subr.mxu0 0.0
  %122 = vmatpush2.msra.mxu0 0.0
  %123 = vmatprep.subr.mxu0 0.0
  %124 = vmatpush2.msra.mxu0 0.0
  %125 = vmatprep.subr.mxu0 0.0
  %126 = vmatpush2.msra.mxu0 0.0
  %127 = vmatprep.subr.mxu0 0.0
  %128 = vmatpush2.msra.mxu0 0.0
  %129 = vmatprep.subr.mxu0 0.0
  %130 = vmatpush2.msra.mxu0 0.0
  %131 = vmatprep.subr.mxu0 0.0
  %132 = vmatpush2.msra.mxu0 0.0
  %133 = vmatprep.subr.mxu0 0.0
  %134 = vmatpush2.msra.mxu0 0.0
  %135 = vmatprep.subr.mxu0 0.0
  %136 = vmatpush2.msra.mxu0 0.0
  %137 = vmatprep.subr.mxu0 0.0
  %138 = vmatpush2.msra.mxu0 0.0
  %139 = vmatprep.subr.mxu0 0.0
  %140 = vmatpush2.msra.mxu0 0.0
  %141 = vmatprep.mubr.f32.mxu0 0.0
  %142 = vmatmul.mubr.f32.gmra.mxu0 %v59
  %v143 = vpop.f32.mrf.mxu0
  %v144 = vadd.f32 %v35, %v143
  %v145 = vpop.f32.mrf.mxu0
  %146 = vmatprep.mubr.f32.mxu0 0.0
  %147 = vmatmul.mubr.f32.gmra.mxu0 %v62
  %v148 = vpop.f32.mrf.mxu0
  %v149 = vadd.f32 %v40, %v148
  %v150 = vpop.f32.mrf.mxu0
  %151 = vmatprep.mubr.f32.mxu0 0.0
  %152 = vmatmul.mubr.f32.gmra.mxu0 %v65
  %v153 = vpop.f32.mrf.mxu0
  %v154 = vadd.f32 %v45, %v153
  %v155 = vpop.f32.mrf.mxu0
  %156 = vmatprep.mubr.f32.mxu0 0.0
  %157 = vmatmul.mubr.f32.gmra.mxu0 %v68
  %v158 = vpop.f32.mrf.mxu0
  %v159 = vadd.f32 %v50, %v158
  %v160 = vpop.f32.mrf.mxu0
  %161 = vmatprep.mubr.f32.mxu0 0.0
  %162 = vmatmul.mubr.f32.gmra.mxu0 %v71
  %v163 = vpop.f32.mrf.mxu0
  %v164 = vadd.f32 %v55, %v163
  %v165 = vpop.f32.mrf.mxu0
  %166 = vdwg.mxu0
  %v167 = vmax.f32 %v144, 0.0
  %v168 = vmax.f32 %v149, 0.0
  %v169 = vmax.f32 %v154, 0.0
  %v170 = vmax.f32 %v159, 0.0
  %v171 = vmax.f32 %v164, 0.0
  %v172 = vld [vmem:[%s3] sm:$0xff]
  %v173 = vld [vmem:[%s3 + $0x8] sm:$0xff]
  %v174 = vld [vmem:[%s3 + $0x10] sm:$0xff]
  %v175 = vld [vmem:[%s3 + $0x18] sm:$0xff]
  %v176 = vld [vmem:[%s3 + $0x20] sm:$0xf]
  %177 = vxpose.xlu0.b32.start [1/16] %v167, 128
  %178 = vxpose.xlu0.b32.cont [2/16] %v168, 128
  %179 = vxpose.xlu0.b32.cont [3/16] %v169, 128
  %180 = vxpose.xlu0.b32.cont [4/16] %v170, 128
  %181 = vxpose.xlu0.b32.cont [5/16] %v171, 128
  %182 = vxpose.xlu0.b32.cont [6/16] 0.0, 128
  %183 = vxpose.xlu0.b32.cont [7/16] 0.0, 128
  %184 = vxpose.xlu0.b32.cont [8/16] 0.0, 128
  %185 = vxpose.xlu0.b32.cont [9/16] 0.0, 128
  %186 = vxpose.xlu0.b32.cont [10/16] 0.0, 128
  %187 = vxpose.xlu0.b32.cont [11/16] 0.0, 128
  %188 = vxpose.xlu0.b32.cont [12/16] 0.0, 128
  %189 = vxpose.xlu0.b32.cont [13/16] 0.0, 128
  %190 = vxpose.xlu0.b32.cont [14/16] 0.0, 128
  %191 = vxpose.xlu0.b32.cont [15/16] 0.0, 128
  %192 = vxpose.xlu0.b32.end [16/16] 0.0, 128
  %v193 = vpop.trf.xlu0
  %v194 = vpop.trf.xlu0
  %v195 = vpop.trf.xlu0
  %v196 = vpop.trf.xlu0
  %v197 = vpop.trf.xlu0
  %v198 = vpop.trf.xlu0
  %v199 = vpop.trf.xlu0
  %v200 = vpop.trf.xlu0
  %v201 = vpop.trf.xlu0
  %v202 = vpop.trf.xlu0
  %v203 = vpop.trf.xlu0
  %v204 = vpop.trf.xlu0
  %v205 = vpop.trf.xlu0
  %v206 = vpop.trf.xlu0
  %v207 = vpop.trf.xlu0
  %v208 = vpop.trf.xlu0
  %v210 = vsel %vm57, %v193, 0
  %v213 = vsel %vm57, %v194, 0
  %v216 = vsel %vm57, %v195, 0
  %v219 = vsel %vm73, %v176, 0
  %221 = vmatprep.subr.mxu0 0.0
  %222 = vmatpush1.msra.mxu0 0.0
  %223 = vmatprep.subr.mxu0 0.0
  %224 = vmatpush1.msra.mxu0 0.0
  %225 = vmatprep.subr.mxu0 0.0
  %226 = vmatpush1.msra.mxu0 0.0
  %227 = vmatprep.subr.mxu0 0.0
  %228 = vmatpush1.msra.mxu0 0.0
  %229 = vmatprep.subr.mxu0 0.0
  %230 = vmatpush1.msra.mxu0 0.0
  %231 = vmatprep.subr.mxu0 0.0
  %232 = vmatpush1.msra.mxu0 0.0
  %233 = vmatprep.subr.mxu0 0.0
  %234 = vmatpush1.msra.mxu0 0.0
  %235 = vmatprep.subr.mxu0 0.0
  %236 = vmatpush1.msra.mxu0 0.0
  %237 = vmatprep.subr.mxu0 0.0
  %238 = vmatpush1.msra.mxu0 0.0
  %239 = vmatprep.subr.mxu0 0.0
  %240 = vmatpush1.msra.mxu0 0.0
  %241 = vmatprep.subr.mxu0 0.0
  %242 = vmatpush1.msra.mxu0 0.0
  %243 = vmatprep.subr.mxu0 0.0
  %244 = vmatpush1.msra.mxu0 %v219
  %245 = vmatprep.subr.mxu0 0.0
  %246 = vmatpush1.msra.mxu0 %v175
  %247 = vmatprep.subr.mxu0 0.0
  %248 = vmatpush1.msra.mxu0 %v174
  %249 = vmatprep.subr.mxu0 0.0
  %250 = vmatpush1.msra.mxu0 %v173
  %251 = vmatprep.subr.mxu0 0.0
  %252 = vmatpush1.msra.mxu0 %v172
  %253 = vmatprep.subr.mxu0 0.0
  %254 = vmatpush2.msra.mxu0 0.0
  %255 = vmatprep.subr.mxu0 0.0
  %256 = vmatpush2.msra.mxu0 0.0
  %257 = vmatprep.subr.mxu0 0.0
  %258 = vmatpush2.msra.mxu0 0.0
  %259 = vmatprep.subr.mxu0 0.0
  %260 = vmatpush2.msra.mxu0 0.0
  %261 = vmatprep.subr.mxu0 0.0
  %262 = vmatpush2.msra.mxu0 0.0
  %263 = vmatprep.subr.mxu0 0.0
  %264 = vmatpush2.msra.mxu0 0.0
  %265 = vmatprep.subr.mxu0 0.0
  %266 = vmatpush2.msra.mxu0 0.0
  %267 = vmatprep.subr.mxu0 0.0
  %268 = vmatpush2.msra.mxu0 0.0
  %269 = vmatprep.subr.mxu0 0.0
  %270 = vmatpush2.msra.mxu0 0.0
  %271 = vmatprep.subr.mxu0 0.0
  %272 = vmatpush2.msra.mxu0 0.0
  %273 = vmatprep.subr.mxu0 0.0
  %274 = vmatpush2.msra.mxu0 0.0
  %275 = vmatprep.subr.mxu0 0.0
  %276 = vmatpush2.msra.mxu0 0.0
  %277 = vmatprep.subr.mxu0 0.0
  %278 = vmatpush2.msra.mxu0 0.0
  %279 = vmatprep.subr.mxu0 0.0
  %280 = vmatpush2.msra.mxu0 0.0
  %281 = vmatprep.subr.mxu0 0.0
  %282 = vmatpush2.msra.mxu0 0.0
  %283 = vmatprep.subr.mxu0 0.0
  %284 = vmatpush2.msra.mxu0 0.0
  %285 = vmatprep.mubr.f32.mxu0 0.0
  %286 = vmatmul.mubr.f32.gmra.mxu0 %v210
  %v287 = vpop.f32.mrf.mxu0
  %v288 = vadd.f32 0.0, %v287
  %v289 = vpop.f32.mrf.mxu0
  %290 = vmatprep.mubr.f32.mxu0 0.0
  %291 = vmatmul.mubr.f32.gmra.mxu0 %v213
  %v292 = vpop.f32.mrf.mxu0
  %v293 = vadd.f32 0.0, %v292
  %v294 = vpop.f32.mrf.mxu0
  %295 = vmatprep.mubr.f32.mxu0 0.0
  %296 = vmatmul.mubr.f32.gmra.mxu0 %v216
  %v297 = vpop.f32.mrf.mxu0
  %v298 = vadd.f32 0.0, %v297
  %v299 = vpop.f32.mrf.mxu0
  %300 = vdwg.mxu0
  %301 = vst [vmem:[%s4] sm:$0xff] %v288
  %302 = vst [vmem:[%s4 + $0x8] sm:$0xff] %v293
  %303 = vst [vmem:[%s4 + $0x10] sm:$0xff] %v298
  // Predicated region
  $region18: #{decoder_projection_forward.3} parent=0 // pred_check
    _
  $region19: #{decoder_projection_forward.3} parent=0 // pred_check_branch
    %305 = sbr.rel (0) target = $region21
  $region20: #{decoder_projection_forward.3} parent=0 // pred_region
    _
  $region21: #{decoder_projection_forward.3} parent=0 // pred_fallthru
    _
  // Predicated region
  $region22: #{decoder_projection_forward.3} parent=0 // pred_check
    _
  $region23: #{decoder_projection_forward.3} parent=0 // pred_check_branch
    %307 = sbr.rel (0) target = $region25
  $region24: #{decoder_projection_forward.3} parent=0 // pred_region
    _
  $region25: #{decoder_projection_forward.3} parent=0 // pred_fallthru
    _

</llo_original>
